<compile_context>
chip_gen: v7x
topology: tpu7x:2x2x1
jax: 0.10.0
libtpu: 0.0.40
codegen_flags: <defaults>
</compile_context>

<pallas_src>
import math
import numpy as np
import jax
import jax.numpy as jnp
from jax import lax
from jax.experimental import pallas as pl
from jax.experimental.pallas import tpu as pltpu

# ----------------------------- static configuration -----------------------------
B, N, E = 2, 16, 32          # batch, nodes, edges
D_IN = 8                     # in_irreps  "8x0e"
SH_DIM = 4                   # sh_irreps  "1x0e + 1x1o"
MUL_OUT0, MUL_OUT1 = 8, 4    # out_irreps "8x0e + 4x1o"
D_OUT = MUL_OUT0 + 3 * MUL_OUT1              # 20
NEF = 16                     # n_edge_features
W_NUMEL = D_IN * MUL_OUT0 + D_IN * MUL_OUT1  # 96 (e3nn FullyConnectedTensorProduct weights)
NUM_MODES = 2
BN_EPS = 1e-5
PAD = 128                    # lane-dense width for slabs / output
# e3nn normalization: both paths (0e x 0e -> 0e, 0e x 1o -> 1o) get 1/sqrt(D_IN)
INV_SQRT_IN = 1.0 / math.sqrt(D_IN)

# The fused kernel uses the exact closed form of SimplifiedSpectralConv1d for a length-2
# batch FFT (rfft/irfft over axis 0 with n=2 keeps both bins real; the real irfft output
# drops every imaginary term), i.e. x_t[b] = x[b] @ sum_m Re(W_m).  Valid only for B == 2
# and modes >= 2, so it is a hard requirement (was a TODO, now asserted).
assert B == 2 and min(NUM_MODES, 4) >= 2, "closed-form spectral conv requires B==2, modes>=2"
# TODO(synk): a general batch-axis rfft/irfft (B > 2) has no Pallas primitive; only the
#             exact n=2 closed form is fused here.

# Packed edge-slab lane layout:  [ edge_attr (16) | ones (1) | edge_sh (4) | zeros ]
L_ONES = NEF                 # lane 16: constant 1.0 (bias folding)
L_SH = NEF + 1               # lanes 17:21: spherical harmonics
FRONT = 24                   # lanes 0:FRONT feed the edge-MLP / SH-expansion matmuls

# Packed parameter-slab row layout (all offsets 8-aligned, 128 lanes wide).
R_W1 = 0                     # (FRONT, FRONT)   edge-MLP layer 1 + bias row + ones passthrough
R_W2 = R_W1 + FRONT          # (FRONT, W_NUMEL) edge-MLP layer 2 + bias row
R_T = R_W2 + FRONT           # (FRONT, PAD)     spherical-harmonic -> output-lane expansion
R_WS = R_T + FRONT           # (D_IN, W_NUMEL)  spectral weight folded into path replication
R_GC = R_WS + D_IN           # (W_NUMEL, PAD)   group-sum over u + output-lane expansion
R_GB = R_GC + W_NUMEL        # row 0 = gamma (zero-padded), row 1 = beta (zero-padded)
SLAB_ROWS = R_GB + 8         # 184


# ---------------------- static tensor-product helper matrices --------------------
def _build_static_mats():
    s = np.zeros((D_IN, W_NUMEL), np.float32)    # replicate x_src over tensor-product paths
    gc = np.zeros((W_NUMEL, PAD), np.float32)    # group-sum over u + expand to output lanes
    t = np.zeros((FRONT, PAD), np.float32)       # edge-slab lanes -> SH expansion on out lanes
    off = D_IN * MUL_OUT0
    for u in range(D_IN):
        for w in range(MUL_OUT0):
            s[u, u * MUL_OUT0 + w] = 1.0
            gc[u * MUL_OUT0 + w, w] = INV_SQRT_IN
        for w in range(MUL_OUT1):
            s[u, off + u * MUL_OUT1 + w] = 1.0
            for m in range(3):
                gc[off + u * MUL_OUT1 + w, MUL_OUT0 + 3 * w + m] = INV_SQRT_IN
    t[L_SH + 0, :MUL_OUT0] = 1.0                 # l=0 SH component -> 8x0e lanes
    for w in range(MUL_OUT1):
        for m in range(3):
            t[L_SH + 1 + m, MUL_OUT0 + 3 * w + m] = 1.0
    return s, gc, t


S_NP, GC_NP, T_NP = _build_static_mats()


# ----------------------------- fused Pallas kernel --------------------------------
def _fused_kernel(x_ref, gidx_ref, sidx_ref, edge_ref, slab_ref, out_ref):
    # x_ref:(B*N, D_IN) f32   gidx_ref:(B*E, 1) i32   sidx_ref:(1, B*E) i32
    # edge_ref:(E, PAD) f32   slab_ref:(SLAB_ROWS, PAD) f32   out_ref:(B*N, PAD) f32
    f32 = jnp.float32

    # Static views into the packed parameter slab (8-aligned rows, lane offset 0).
    w1aug = slab_ref[R_W1:R_W1 + FRONT, 0:FRONT]
    w2aug = slab_ref[R_W2:R_W2 + FRONT, 0:W_NUMEL]
    t_mat = slab_ref[R_T:R_T + FRONT, :]
    ws_s = slab_ref[R_WS:R_WS + D_IN, 0:W_NUMEL]
    gc = slab_ref[R_GC:R_GC + W_NUMEL, :]
    gb = slab_ref[R_GB:R_GB + 8, :]
    gamma, beta = gb[0:1, :], gb[1:2, :]

    # 1. gather x[b, src[e]] via one-hot matmul (MXU). The spectral conv AND the
    #    tensor-product path replication are pre-folded into ws_s, so only two
    #    dependent matmuls sit before the per-edge weights.
    gather = (lax.broadcasted_iota(jnp.int32, (B * E, B * N), 1)
              == gidx_ref[...]).astype(f32)                                  # (B*E, B*N)
    x_src = jnp.dot(gather, x_ref[...], preferred_element_type=f32)          # (B*E, D_IN)
    x_rep = jnp.dot(x_src, ws_s, preferred_element_type=f32)                 # (B*E, W_NUMEL)

    # 2. edge MLP (both biases folded via the ones lane; relu(1) == 1 passthrough) and
    #    spherical-harmonic output-lane expansion, each computed once at E rows.
    front = edge_ref[:, 0:FRONT]                                             # (E, FRONT)
    h = jnp.maximum(jnp.dot(front, w1aug, preferred_element_type=f32), 0.0)  # (E, FRONT)
    ew = jnp.dot(h, w2aug, preferred_element_type=f32)                       # (E, W_NUMEL)
    sh_exp = jnp.dot(front, t_mat, preferred_element_type=f32)               # (E, PAD)

    # 3. e3nn FullyConnectedTensorProduct: per-path weight (VPU, batch broadcast via a
    #    free leading-dim reshape) -> group-sum + lane expansion (MXU) -> SH multiply.
    p = (x_rep.reshape(B, E, W_NUMEL) * ew[None]).reshape(B * E, W_NUMEL)
    c_exp = jnp.dot(p, gc, preferred_element_type=f32)                       # (B*E, PAD)
    tp = (c_exp.reshape(B, E, PAD) * sh_exp[None]).reshape(B * E, PAD)

    # 4. scatter-mean over destination nodes: one-hot matmul (MXU) for the sums, lane
    #    reduction (XLU) for the counts, reciprocal on the EUP (counts are small positive
    #    integers, approx error ~1e-3 relative — well inside tolerance).
    scat = (lax.broadcasted_iota(jnp.int32, (B * N, B * E), 0)
            == sidx_ref[...]).astype(f32)                                    # (B*N, B*E)
    sums = jnp.dot(scat, tp, preferred_element_type=f32)                     # (B*N, PAD)
    counts = jnp.sum(scat, axis=1, keepdims=True)                            # (B*N, 1)
    node = sums * pl.reciprocal(jnp.maximum(counts, 1.0), approx=True)

    # 5. BatchNorm1d (training statistics, biased variance) fused in; padded lanes have
    #    gamma = beta = 0 so they come out exactly zero.
    mean = jnp.mean(node, axis=0, keepdims=True)
    var = jnp.mean(jnp.square(node - mean), axis=0, keepdims=True)
    out_ref[...] = (node - mean) * lax.rsqrt(var + BN_EPS) * gamma + beta


# ------------------------------ operand packing -----------------------------------
def _build_param_slab(params):
    """Pack every weight / static matrix / BN affine into one (SLAB_ROWS, 128) slab."""
    f32 = jnp.float32
    w1a = jnp.zeros((FRONT, PAD), f32)
    w1a = w1a.at[:NEF, :NEF].set(params['w1'].astype(f32))
    w1a = w1a.at[NEF, :NEF].set(params['b1'][0].astype(f32))    # b1 folded (ones lane)
    w1a = w1a.at[NEF, NEF].set(1.0)                              # ones passthrough for b2

    w2a = jnp.zeros((FRONT, PAD), f32)
    w2a = w2a.at[:NEF, :W_NUMEL].set(params['w2'].astype(f32))
    w2a = w2a.at[NEF, :W_NUMEL].set(params['b2'][0].astype(f32))  # b2 folded

    # closed-form spectral weight (sum of real parts of the kept modes), folded into the
    # tensor-product replication matrix:  ws_s = (sum_m Re(W_m)) @ S
    w_spec = jnp.sum(params['spec_wr'], axis=-1).astype(f32)                # (D_IN, D_IN)
    ws = jnp.zeros((D_IN, PAD), f32).at[:, :W_NUMEL].set(w_spec @ jnp.asarray(S_NP))

    gb = jnp.zeros((8, PAD), f32)
    gb = gb.at[0, :D_OUT].set(params['gamma'][0].astype(f32))
    gb = gb.at[1, :D_OUT].set(params['beta'][0].astype(f32))

    return jnp.concatenate(
        [w1a, w2a, jnp.asarray(T_NP), ws, jnp.asarray(GC_NP), gb], axis=0)  # (184, 128)


# --------------------------------- forward wrapper -------------------------------
@jax.jit
def forward(x, edge_index, edge_attr, edge_sh, params):
    if edge_index.shape[1] == 0:
        # Mirrors the PyTorch module exactly: with no edges it returns input-shaped zeros
        # (last dim D_IN, not D_OUT) and skips the tensor product / BatchNorm entirely.
        return jnp.zeros_like(x)

    assert x.shape[0] == B, "fused kernel hard-codes the B==2 spectral-conv closed form"

    src = edge_index[0].astype(jnp.int32)
    dst = edge_index[1].astype(jnp.int32)
    boff = jnp.arange(B, dtype=jnp.int32)[:, None] * N
    gidx = (boff + src[None, :]).reshape(B * E, 1)       # global source-node index (b*N+src)
    sidx = (boff + dst[None, :]).reshape(1, B * E)       # global destination-node index

    # Lane-dense packed operands: one edge slab + one parameter slab (2 DMAs instead of ~12).
    edge_slab = jnp.concatenate(
        [edge_attr.astype(jnp.float32),
         jnp.ones((E, 1), jnp.float32),                  # ones lane for bias folding
         edge_sh.astype(jnp.float32),
         jnp.zeros((E, PAD - L_SH - SH_DIM), jnp.float32)], axis=1)
    param_slab = _build_param_slab(params)

    vmem = pltpu.MemorySpace.VMEM
    out128 = pl.pallas_call(
        _fused_kernel,
        out_shape=jax.ShapeDtypeStruct((B * N, PAD), jnp.float32),
        in_specs=[pl.BlockSpec(memory_space=vmem)] * 5,
        out_specs=pl.BlockSpec(memory_space=vmem),
        cost_estimate=pl.CostEstimate(flops=2_600_000, transcendentals=192,
                                      bytes_accessed=150_000),
    )(x.reshape(B * N, D_IN).astype(jnp.float32), gidx, sidx, edge_slab, param_slab)

    return out128[:, :D_OUT].reshape(B, N, D_OUT)


# --------------------------------- pure-JAX reference ----------------------------
def spectral_time_conv(x_scalar, w_complex):
    """Faithful rfft/irfft path (reference only). x:(B,N,Cin), w:(Cin,Cout,modes)."""
    Bb = x_scalar.shape[0]
    n = min(8, Bb)
    x_ft = jnp.fft.rfft(x_scalar.astype(jnp.float32), n=n, axis=0)
    modes = w_complex.shape[-1]
    k = min(modes, x_ft.shape[0])
    out_low = jnp.einsum('bni,iom->bno', x_ft[:k], w_complex)    # sums over i AND m
    zeros_hi = jnp.zeros((x_ft.shape[0] - k,) + out_low.shape[1:], out_low.dtype)
    out_ft = jnp.concatenate([out_low, zeros_hi], axis=0)
    y = jnp.fft.irfft(out_ft, n=n, axis=0)
    if y.shape[0] < Bb:
        y = jnp.concatenate([y, jnp.zeros((Bb - y.shape[0],) + y.shape[1:], y.dtype)], axis=0)
    return y[:Bb]


def reference_forward(x, edge_index, edge_attr, edge_sh, params):
    w_c = params['spec_wr'] + 1j * params['spec_wi']
    x_t = spectral_time_conv(x, w_c)
    src, dst = edge_index[0], edge_index[1]
    ew = jnp.maximum(edge_attr @ params['w1'] + params['b1'], 0.0) @ params['w2'] + params['b2']
    w_p1 = ew[:, :D_IN * MUL_OUT0].reshape(E, D_IN, MUL_OUT0)
    w_p2 = ew[:, D_IN * MUL_OUT0:].reshape(E, D_IN, MUL_OUT1)
    outs = []
    for b in range(B):
        x_src = x_t[b][src]
        c0 = jnp.einsum('eu,euw->ew', x_src, w_p1)
        c1 = jnp.einsum('eu,euw->ew', x_src, w_p2)
        out_l0 = INV_SQRT_IN * c0 * edge_sh[:, 0:1]
        out_l1 = INV_SQRT_IN * jnp.einsum('ew,em->ewm', c1, edge_sh[:, 1:4]).reshape(E, 3 * MUL_OUT1)
        tp_out = jnp.concatenate([out_l0, out_l1], axis=1)
        sums = jnp.zeros((N, D_OUT), jnp.float32).at[dst].add(tp_out)
        counts = jnp.zeros((N, 1), jnp.float32).at[dst].add(1.0)
        outs.append(sums / jnp.maximum(counts, 1.0))
    x_out = jnp.stack(outs, axis=0)
    x_flat = x_out.reshape(-1, D_OUT)
    mean = x_flat.mean(0, keepdims=True)
    var = jnp.square(x_flat - mean).mean(0, keepdims=True)
    x_bn = (x_flat - mean) / jnp.sqrt(var + BN_EPS) * params['gamma'] + params['beta']
    return x_bn.reshape(B, N, D_OUT)


# ------------------------------------- params ------------------------------------
def init_params(key):
    ks = jax.random.split(key, 6)
    scale = 1.0 / (D_IN * MUL_OUT0)   # SimplifiedSpectralConv1d: 1/(in_channels*out_channels)
    spec_wr = scale * jax.random.uniform(ks[0], (D_IN, MUL_OUT0, min(NUM_MODES, 4)), jnp.float32)
    spec_wi = scale * jax.random.uniform(ks[1], (D_IN, MUL_OUT0, min(NUM_MODES, 4)), jnp.float32)
    w1 = 0.3 * jax.random.normal(ks[2], (NEF, NEF), jnp.float32)
    b1 = 0.1 * jax.random.normal(ks[3], (1, NEF), jnp.float32)
    w2 = 0.3 * jax.random.normal(ks[4], (NEF, W_NUMEL), jnp.float32)
    b2 = 0.1 * jax.random.normal(ks[5], (1, W_NUMEL), jnp.float32)
    gamma = jnp.ones((1, D_OUT), jnp.float32)   # BatchNorm1d affine defaults
    beta = jnp.zeros((1, D_OUT), jnp.float32)
    return dict(spec_wr=spec_wr, spec_wi=spec_wi, w1=w1, b1=b1, w2=w2, b2=b2,
                gamma=gamma, beta=beta)


if __name__ == "__main__":
    key = jax.random.PRNGKey(0)
    kx, ke, ka, kv, kp = jax.random.split(key, 5)
    params = init_params(kp)

    x = jax.random.normal(kx, (B, N, D_IN), jnp.float32)
    edge_index = jax.random.randint(ke, (2, E), 0, N, dtype=jnp.int32)
    edge_attr = jax.random.normal(ka, (E, NEF), jnp.float32)
    # spherical harmonics l=0,1 (component normalization): [1, sqrt(3)*n_x, sqrt(3)*n_y, sqrt(3)*n_z]
    vec = jax.random.normal(kv, (E, 3), jnp.float32)
    vec = vec / jnp.linalg.norm(vec, axis=1, keepdims=True)
    edge_sh = jnp.concatenate([jnp.ones((E, 1), jnp.float32), math.sqrt(3.0) * vec], axis=1)

    out = forward(x, edge_index, edge_attr, edge_sh, params)
    out = jax.block_until_ready(out)

    ref = reference_forward(x, edge_index, edge_attr, edge_sh, params)
    assert out.shape == (B, N, D_OUT)
    assert bool(jnp.all(jnp.isfinite(out)))
    np.testing.assert_allclose(np.asarray(out), np.asarray(ref), rtol=2e-2, atol=2e-2)
    print("KERNEL_OK")
</pallas_src>

<mosaic_0001>
module attributes {stable_mosaic.version = 11 : i64} {
  func.func @_fused_kernel(%arg0: memref<32x8xf32, #tpu.memory_space<vmem>>, %arg1: memref<64x1xi32, #tpu.memory_space<vmem>>, %arg2: memref<1x64xi32, #tpu.memory_space<vmem>>, %arg3: memref<32x128xf32, #tpu.memory_space<vmem>>, %arg4: memref<184x128xf32, #tpu.memory_space<vmem>>, %arg5: memref<32x128xf32, #tpu.memory_space<vmem>>) attributes {dimension_semantics = [], scalar_prefetch = 0 : i64, scratch_operands = 0 : i64, tpu.core_type = #tpu.core_type<tc>} {
    %c0 = arith.constant 0 : index
    %c0_0 = arith.constant 0 : index
    %0 = vector.load %arg4[%c0, %c0_0] : memref<184x128xf32, #tpu.memory_space<vmem>>, vector<24x24xf32>
    %c24 = arith.constant 24 : index
    %c0_1 = arith.constant 0 : index
    %1 = vector.load %arg4[%c24, %c0_1] : memref<184x128xf32, #tpu.memory_space<vmem>>, vector<24x96xf32>
    %c48 = arith.constant 48 : index
    %c0_2 = arith.constant 0 : index
    %2 = vector.load %arg4[%c48, %c0_2] : memref<184x128xf32, #tpu.memory_space<vmem>>, vector<24x128xf32>
    %c72 = arith.constant 72 : index
    %c0_3 = arith.constant 0 : index
    %3 = vector.load %arg4[%c72, %c0_3] : memref<184x128xf32, #tpu.memory_space<vmem>>, vector<8x96xf32>
    %c80 = arith.constant 80 : index
    %c0_4 = arith.constant 0 : index
    %4 = vector.load %arg4[%c80, %c0_4] : memref<184x128xf32, #tpu.memory_space<vmem>>, vector<96x128xf32>
    %c176 = arith.constant 176 : index
    %c0_5 = arith.constant 0 : index
    %5 = vector.load %arg4[%c176, %c0_5] : memref<184x128xf32, #tpu.memory_space<vmem>>, vector<8x128xf32>
    %6 = vector.extract_strided_slice %5 {offsets = [0, 0], sizes = [1, 128], strides = [1, 1]} : vector<8x128xf32> to vector<1x128xf32>
    %7 = vector.extract_strided_slice %5 {offsets = [1, 0], sizes = [1, 128], strides = [1, 1]} : vector<8x128xf32> to vector<1x128xf32>
    %8 = tpu.iota {dimensions = array<i32: 1>} : vector<64x32xi32>
    %c0_6 = arith.constant 0 : index
    %c0_7 = arith.constant 0 : index
    %9 = vector.load %arg1[%c0_6, %c0_7] : memref<64x1xi32, #tpu.memory_space<vmem>>, vector<64x1xi32>
    %10 = vector.broadcast %9 : vector<64x1xi32> to vector<64x32xi32>
    %11 = arith.cmpi eq, %8, %10 : vector<64x32xi32>
    %12 = arith.extui %11 : vector<64x32xi1> to vector<64x32xi32>
    %13 = arith.sitofp %12 : vector<64x32xi32> to vector<64x32xf32>
    %c0_8 = arith.constant 0 : index
    %c0_9 = arith.constant 0 : index
    %14 = vector.load %arg0[%c0_8, %c0_9] : memref<32x8xf32, #tpu.memory_space<vmem>>, vector<32x8xf32>
    %cst = arith.constant dense<0.000000e+00> : vector<64x8xf32>
    %15 = tpu.matmul %13, %14, %cst {dimension_numbers = #tpu.dot_dimension_numbers<[1], [0], [0], [1], [0, 0, 1, 1], [], []>} : vector<64x32xf32>, vector<32x8xf32>, vector<64x8xf32> -> vector<64x8xf32>
    %cst_10 = arith.constant dense<0.000000e+00> : vector<64x96xf32>
    %16 = tpu.matmul %15, %3, %cst_10 {dimension_numbers = #tpu.dot_dimension_numbers<[1], [0], [0], [1], [0, 0, 1, 1], [], []>} : vector<64x8xf32>, vector<8x96xf32>, vector<64x96xf32> -> vector<64x96xf32>
    %c0_11 = arith.constant 0 : index
    %c0_12 = arith.constant 0 : index
    %17 = vector.load %arg3[%c0_11, %c0_12] : memref<32x128xf32, #tpu.memory_space<vmem>>, vector<32x24xf32>
    %cst_13 = arith.constant dense<0.000000e+00> : vector<32x24xf32>
    %18 = tpu.matmul %17, %0, %cst_13 {dimension_numbers = #tpu.dot_dimension_numbers<[1], [0], [0], [1], [0, 0, 1, 1], [], []>} : vector<32x24xf32>, vector<24x24xf32>, vector<32x24xf32> -> vector<32x24xf32>
    %cst_14 = arith.constant 0.000000e+00 : f32
    %19 = vector.broadcast %cst_14 : f32 to vector<32x24xf32>
    %20 = arith.maximumf %18, %19 : vector<32x24xf32>
    %cst_15 = arith.constant dense<0.000000e+00> : vector<32x96xf32>
    %21 = tpu.matmul %20, %1, %cst_15 {dimension_numbers = #tpu.dot_dimension_numbers<[1], [0], [0], [1], [0, 0, 1, 1], [], []>} : vector<32x24xf32>, vector<24x96xf32>, vector<32x96xf32> -> vector<32x96xf32>
    %cst_16 = arith.constant dense<0.000000e+00> : vector<32x128xf32>
    %22 = tpu.matmul %17, %2, %cst_16 {dimension_numbers = #tpu.dot_dimension_numbers<[1], [0], [0], [1], [0, 0, 1, 1], [], []>} : vector<32x24xf32>, vector<24x128xf32>, vector<32x128xf32> -> vector<32x128xf32>
    %23 = vector.shape_cast %16 : vector<64x96xf32> to vector<2x32x96xf32>
    %24 = vector.shape_cast %21 : vector<32x96xf32> to vector<1x32x96xf32>
    %25 = vector.broadcast %24 : vector<1x32x96xf32> to vector<2x32x96xf32>
    %26 = arith.mulf %23, %25 : vector<2x32x96xf32>
    %27 = vector.shape_cast %26 : vector<2x32x96xf32> to vector<64x96xf32>
    %cst_17 = arith.constant dense<0.000000e+00> : vector<64x128xf32>
    %28 = tpu.matmul %27, %4, %cst_17 {dimension_numbers = #tpu.dot_dimension_numbers<[1], [0], [0], [1], [0, 0, 1, 1], [], []>} : vector<64x96xf32>, vector<96x128xf32>, vector<64x128xf32> -> vector<64x128xf32>
    %29 = vector.shape_cast %28 : vector<64x128xf32> to vector<2x32x128xf32>
    %30 = vector.shape_cast %22 : vector<32x128xf32> to vector<1x32x128xf32>
    %31 = vector.broadcast %30 : vector<1x32x128xf32> to vector<2x32x128xf32>
    %32 = arith.mulf %29, %31 : vector<2x32x128xf32>
    %33 = vector.shape_cast %32 : vector<2x32x128xf32> to vector<64x128xf32>
    %34 = tpu.iota {dimensions = array<i32: 0>} : vector<32x64xi32>
    %c0_18 = arith.constant 0 : index
    %c0_19 = arith.constant 0 : index
    %35 = vector.load %arg2[%c0_18, %c0_19] : memref<1x64xi32, #tpu.memory_space<vmem>>, vector<1x64xi32>
    %36 = vector.broadcast %35 : vector<1x64xi32> to vector<32x64xi32>
    %37 = arith.cmpi eq, %34, %36 : vector<32x64xi32>
    %38 = arith.extui %37 : vector<32x64xi1> to vector<32x64xi32>
    %39 = arith.sitofp %38 : vector<32x64xi32> to vector<32x64xf32>
    %cst_20 = arith.constant dense<0.000000e+00> : vector<32x128xf32>
    %40 = tpu.matmul %39, %33, %cst_20 {dimension_numbers = #tpu.dot_dimension_numbers<[1], [0], [0], [1], [0, 0, 1, 1], [], []>} : vector<32x64xf32>, vector<64x128xf32>, vector<32x128xf32> -> vector<32x128xf32>
    %cst_21 = arith.constant dense<0.000000e+00> : vector<32xf32>
    %41 = vector.multi_reduction <add>, %39, %cst_21 [1] : vector<32x64xf32> to vector<32xf32>
    %42 = vector.shape_cast %41 : vector<32xf32> to vector<32x1xf32>
    %cst_22 = arith.constant 1.000000e+00 : f32
    %43 = vector.broadcast %cst_22 : f32 to vector<32x1xf32>
    %44 = arith.maximumf %42, %43 : vector<32x1xf32>
    %45 = tpu.reciprocal %44 {approx = true} : vector<32x1xf32> -> vector<32x1xf32>
    %46 = vector.broadcast %45 : vector<32x1xf32> to vector<32x128xf32>
    %47 = arith.mulf %40, %46 : vector<32x128xf32>
    %cst_23 = arith.constant dense<0.000000e+00> : vector<128xf32>
    %48 = vector.multi_reduction <add>, %47, %cst_23 [0] : vector<32x128xf32> to vector<128xf32>
    %49 = vector.shape_cast %48 : vector<128xf32> to vector<1x128xf32>
    %cst_24 = arith.constant 3.200000e+01 : f32
    %50 = vector.broadcast %cst_24 : f32 to vector<1x128xf32>
    %51 = arith.divf %49, %50 : vector<1x128xf32>
    %52 = vector.broadcast %51 : vector<1x128xf32> to vector<32x128xf32>
    %53 = arith.subf %47, %52 : vector<32x128xf32>
    %54 = arith.mulf %53, %53 : vector<32x128xf32>
    %cst_25 = arith.constant dense<0.000000e+00> : vector<128xf32>
    %55 = vector.multi_reduction <add>, %54, %cst_25 [0] : vector<32x128xf32> to vector<128xf32>
    %56 = vector.shape_cast %55 : vector<128xf32> to vector<1x128xf32>
    %cst_26 = arith.constant 3.200000e+01 : f32
    %57 = vector.broadcast %cst_26 : f32 to vector<1x128xf32>
    %58 = arith.divf %56, %57 : vector<1x128xf32>
    %59 = vector.broadcast %51 : vector<1x128xf32> to vector<32x128xf32>
    %60 = arith.subf %47, %59 : vector<32x128xf32>
    %cst_27 = arith.constant 9.99999974E-6 : f32
    %61 = vector.broadcast %cst_27 : f32 to vector<1x128xf32>
    %62 = arith.addf %58, %61 : vector<1x128xf32>
    %63 = math.rsqrt %62 : vector<1x128xf32>
    %64 = vector.broadcast %63 : vector<1x128xf32> to vector<32x128xf32>
    %65 = arith.mulf %60, %64 : vector<32x128xf32>
    %66 = vector.broadcast %6 : vector<1x128xf32> to vector<32x128xf32>
    %67 = arith.mulf %65, %66 : vector<32x128xf32>
    %68 = vector.broadcast %7 : vector<1x128xf32> to vector<32x128xf32>
    %69 = arith.addf %67, %68 : vector<32x128xf32>
    %c0_28 = arith.constant 0 : index
    %c0_29 = arith.constant 0 : index
    %70 = vector.load %arg5[%c0_28, %c0_29] : memref<32x128xf32, #tpu.memory_space<vmem>>, vector<32x128xf32>
    tpu.vector_store %arg5[%c0_28, %c0_29], %69 {strides = array<i32>} : memref<32x128xf32, #tpu.memory_space<vmem>>, vector<32x128xf32>,
    return
  }
}

</mosaic_0001>

<llo_original>
// kernel: forward.1
$region0: #{forward.1}
  #allocation0 [shape = 'u32[]', space=smem, size = 0x4, offset = 0x4, fixed_abs, tag = 'smem constant byte address 0x4 - core index']
  #allocation1 [shape = 'u32[144,128]{1,0:T(1,128)}', space=vmem, size = 0x12000, scoped, tag = 'internal scratch']
  %s0 = inlined_call_operand.vmem [shape: f32[32,8], index: 0, kind: input, shape index: {}]
  %s1 = inlined_call_operand.vmem [shape: s32[64,1], index: 1, kind: input, shape index: {}]
  %s2 = inlined_call_operand.vmem [shape: s32[1,64], index: 2, kind: input, shape index: {}]
  %s3 = inlined_call_operand.vmem [shape: f32[32,128], index: 3, kind: input, shape index: {}]
  %s4 = inlined_call_operand.vmem [shape: f32[184,128], index: 4, kind: input, shape index: {}]
  %s5 = inlined_call_operand.hbm [shape: f32[32,128], index: 5, kind: output, shape index: {}]
  %s6 = sld [smem:[#allocation0]]
  $region30: #{forward.1} parent=0
    _
  %s8 = ssub.s32 1, %s6
  %s9 = scalar_select 0, %s8, %s6
  $region1: #{forward.1} parent=0
    #allocation2 [shape = 'u8[16384]{0}', space=vmem, size = 0x4000, scoped, tag = 'output window, operand 0, single buffered']
    #allocation3 [shape = 's32[1]{0}', space=sflag, size = 0x4, scoped, tag = 'scoped memory for forward.1']
    %10 = vsyncpa [#allocation3], 0
    // Predicated region
    $region2: #{forward.1} parent=1 // pred_check
      _
    $region3: #{forward.1} parent=1 // pred_check_branch
      %12 = sbr.rel (0) target = $region5
    $region4: #{forward.1} parent=1 // pred_region
      _
    $region5: #{forward.1} parent=1 // pred_fallthru
      _
    // Predicated region
    $region6: #{forward.1} parent=1 // pred_check
      _
    $region7: #{forward.1} parent=1 // pred_check_branch
      %14 = sbr.rel (0) target = $region9
    $region8: #{forward.1} parent=1 // pred_region
      _
    $region9: #{forward.1} parent=1 // pred_fallthru
      _
    // Predicated region
    $region10: #{forward.1} parent=1 // pred_check
      _
    $region11: #{forward.1} parent=1 // pred_check_branch
      %16 = sbr.rel (0) target = $region13
    $region12: #{forward.1} parent=1 // pred_region
      _
    $region13: #{forward.1} parent=1 // pred_fallthru
      _
    // Predicated region
    $region14: #{forward.1} parent=1 // pred_check
      _
    $region15: #{forward.1} parent=1 // pred_check_branch
      %18 = sbr.rel (0) target = $region17
    $region16: #{forward.1} parent=1 // pred_region
      _
    $region17: #{forward.1} parent=1 // pred_fallthru
      _
    // Predicated region
    $region18: #{forward.1} parent=1 // pred_check
      _
    $region19: #{forward.1} parent=1 // pred_check_branch
      %20 = sbr.rel (0) target = $region21
    $region20: #{forward.1} parent=1 // pred_region
      _
    $region21: #{forward.1} parent=1 // pred_fallthru
      _
    %v21 = vld [vmem:[%s4] sm:$0xff]
    %v22 = vld [vmem:[%s4 + $0x8] sm:$0xff]
    %v23 = vld [vmem:[%s4 + $0x10] sm:$0xff]
    %v24 = vld [vmem:[%s4 + $0x18] sm:$0xff]
    %v25 = vld [vmem:[%s4 + $0x20] sm:$0xff]
    %v26 = vld [vmem:[%s4 + $0x28] sm:$0xff]
    %v27 = vld [vmem:[%s4 + $0x30] sm:$0xff]
    %v28 = vld [vmem:[%s4 + $0x38] sm:$0xff]
    %v29 = vld [vmem:[%s4 + $0x40] sm:$0xff]
    %v30 = vld [vmem:[%s4 + $0x48] sm:$0xff]
    %v31 = vld [vmem:[%s4 + $0x50] sm:$0xff]
    %v32 = vld [vmem:[%s4 + $0x58] sm:$0xff]
    %v33 = vld [vmem:[%s4 + $0x60] sm:$0xff]
    %v34 = vld [vmem:[%s4 + $0x68] sm:$0xff]
    %v35 = vld [vmem:[%s4 + $0x70] sm:$0xff]
    %v36 = vld [vmem:[%s4 + $0x78] sm:$0xff]
    %v37 = vld [vmem:[%s4 + $0x80] sm:$0xff]
    %v38 = vld [vmem:[%s4 + $0x88] sm:$0xff]
    %v39 = vld [vmem:[%s4 + $0x90] sm:$0xff]
    %v40 = vld [vmem:[%s4 + $0x98] sm:$0xff]
    %v41 = vld [vmem:[%s4 + $0xa0] sm:$0xff]
    %v42 = vld [vmem:[%s4 + $0xa8] sm:$0xff]
    %v43 = vld [vmem:[%s4 + $0xb0] sm:$0xff]
    %v44 = vlaneseq
    %v45 = vand.u32 %v44, 127
    %v46 = vld [vmem:[%s1] sm:$0xff]
    %v47 = vld [vmem:[%s1 + $0x8] sm:$0xff]
    %v48 = vld [vmem:[%s1 + $0x10] sm:$0xff]
    %v49 = vld [vmem:[%s1 + $0x18] sm:$0xff]
    %v50 = vld [vmem:[%s1 + $0x20] sm:$0xff]
    %v51 = vld [vmem:[%s1 + $0x28] sm:$0xff]
    %v52 = vld [vmem:[%s1 + $0x30] sm:$0xff]
    %v53 = vld [vmem:[%s1 + $0x38] sm:$0xff]
    %54 = vset.pattern.permute.xlu0 0
    %55 = vperm.xlu0 %54, %v46
    %v56 = vpop.permute.xlu0 %55
    %57 = vset.pattern.permute.xlu0 0
    %58 = vperm.xlu0 %57, %v47
    %v59 = vpop.permute.xlu0 %58
    %60 = vset.pattern.permute.xlu0 0
    %61 = vperm.xlu0 %60, %v48
    %v62 = vpop.permute.xlu0 %61
    %63 = vset.pattern.permute.xlu0 0
    %64 = vperm.xlu0 %63, %v49
    %v65 = vpop.permute.xlu0 %64
    %66 = vset.pattern.permute.xlu0 0
    %67 = vperm.xlu0 %66, %v50
    %v68 = vpop.permute.xlu0 %67
    %69 = vset.pattern.permute.xlu0 0
    %70 = vperm.xlu0 %69, %v51
    %v71 = vpop.permute.xlu0 %70
    %72 = vset.pattern.permute.xlu0 0
    %73 = vperm.xlu0 %72, %v52
    %v74 = vpop.permute.xlu0 %73
    %75 = vset.pattern.permute.xlu0 0
    %76 = vperm.xlu0 %75, %v53
    %v77 = vpop.permute.xlu0 %76
    %vm78 = vcmp.eq.s32.totalorder %v45, %v56
    %vm79 = vcmp.eq.s32.totalorder %v45, %v59
    %vm80 = vcmp.eq.s32.totalorder %v45, %v62
    %vm81 = vcmp.eq.s32.totalorder %v45, %v65
    %vm82 = vcmp.eq.s32.totalorder %v45, %v68
    %vm83 = vcmp.eq.s32.totalorder %v45, %v71
    %vm84 = vcmp.eq.s32.totalorder %v45, %v74
    %vm85 = vcmp.eq.s32.totalorder %v45, %v77
    %v86 = vsel %vm78, 1, 0
    %v87 = vsel %vm79, 1, 0
    %v88 = vsel %vm80, 1, 0
    %v89 = vsel %vm81, 1, 0
    %v90 = vsel %vm82, 1, 0
    %v91 = vsel %vm83, 1, 0
    %v92 = vsel %vm84, 1, 0
    %v93 = vsel %vm85, 1, 0
    %v94 = vcvt.s32.f32 %v86
    %v95 = vcvt.s32.f32 %v87
    %v96 = vcvt.s32.f32 %v88
    %v97 = vcvt.s32.f32 %v89
    %v98 = vcvt.s32.f32 %v90
    %v99 = vcvt.s32.f32 %v91
    %v100 = vcvt.s32.f32 %v92
    %v101 = vcvt.s32.f32 %v93
    %v102 = vld [vmem:[%s0] sm:$0xff]
    %v103 = vld [vmem:[%s0 + $0x8] sm:$0xff]
    %v104 = vld [vmem:[%s0 + $0x10] sm:$0xff]
    %v105 = vld [vmem:[%s0 + $0x18] sm:$0xff]
    %vm106 = vcmask 261120
    %v108 = vsel %vm106, %v94, 0
    %v111 = vsel %vm106, %v95, 0
    %v114 = vsel %vm106, %v96, 0
    %v117 = vsel %vm106, %v97, 0
    %v120 = vsel %vm106, %v98, 0
    %v123 = vsel %vm106, %v99, 0
    %v126 = vsel %vm106, %v100, 0
    %v129 = vsel %vm106, %v101, 0
    %131 = vmatprep.subr.mxu0 0.0
    %132 = vmatpush1.msra.mxu0 %v102
    %133 = vmatprep.subr.mxu0 0.0
    %134 = vmatpush1.msra.mxu0 %v103
    %135 = vmatprep.subr.mxu0 0.0
    %136 = vmatpush1.msra.mxu0 %v104
    %137 = vmatprep.subr.mxu0 0.0
    %138 = vmatpush1.msra.mxu0 %v105
    %139 = vmatprep.subr.mxu0 0.0
    %140 = vmatpush1.msra.mxu0 0.0
    %141 = vmatprep.subr.mxu0 0.0
    %142 = vmatpush1.msra.mxu0 0.0
    %143 = vmatprep.subr.mxu0 0.0
    %144 = vmatpush1.msra.mxu0 0.0
    %145 = vmatprep.subr.mxu0 0.0
    %146 = vmatpush1.msra.mxu0 0.0
    %147 = vmatprep.subr.mxu0 0.0
    %148 = vmatpush1.msra.mxu0 0.0
    %149 = vmatprep.subr.mxu0 0.0
    %150 = vmatpush1.msra.mxu0 0.0
    %151 = vmatprep.subr.mxu0 0.0
    %152 = vmatpush1.msra.mxu0 0.0
    %153 = vmatprep.subr.mxu0 0.0
    %154 = vmatpush1.msra.mxu0 0.0
    %155 = vmatprep.subr.mxu0 0.0
    %156 = vmatpush1.msra.mxu0 0.0
    %157 = vmatprep.subr.mxu0 0.0
    %158 = vmatpush1.msra.mxu0 0.0
    %159 = vmatprep.subr.mxu0 0.0
    %160 = vmatpush1.msra.mxu0 0.0
    %161 = vmatprep.subr.mxu0 0.0
    %162 = vmatpush1.msra.mxu0 0.0
    %163 = vmatprep.subr.mxu0 0.0
    %164 = vmatpush1.msra.mxu0 0.0
    %165 = vmatprep.subr.mxu0 0.0
    %166 = vmatpush1.msra.mxu0 0.0
    %167 = vmatprep.subr.mxu0 0.0
    %168 = vmatpush1.msra.mxu0 0.0
    %169 = vmatprep.subr.mxu0 0.0
    %170 = vmatpush1.msra.mxu0 0.0
    %171 = vmatprep.subr.mxu0 0.0
    %172 = vmatpush1.msra.mxu0 0.0
    %173 = vmatprep.subr.mxu0 0.0
    %174 = vmatpush1.msra.mxu0 0.0
    %175 = vmatprep.subr.mxu0 0.0
    %176 = vmatpush1.msra.mxu0 0.0
    %177 = vmatprep.subr.mxu0 0.0
    %178 = vmatpush1.msra.mxu0 0.0
    %179 = vmatprep.subr.mxu0 0.0
    %180 = vmatpush1.msra.mxu0 0.0
    %181 = vmatprep.subr.mxu0 0.0
    %182 = vmatpush1.msra.mxu0 0.0
    %183 = vmatprep.subr.mxu0 0.0
    %184 = vmatpush1.msra.mxu0 0.0
    %185 = vmatprep.subr.mxu0 0.0
    %186 = vmatpush1.msra.mxu0 0.0
    %187 = vmatprep.subr.mxu0 0.0
    %188 = vmatpush1.msra.mxu0 0.0
    %189 = vmatprep.subr.mxu0 0.0
    %190 = vmatpush1.msra.mxu0 0.0
    %191 = vmatprep.subr.mxu0 0.0
    %192 = vmatpush1.msra.mxu0 0.0
    %193 = vmatprep.subr.mxu0 0.0
    %194 = vmatpush1.msra.mxu0 0.0
    %195 = vmatprep.mubr.f32.mxu0 0.0
    %196 = vmatmul.mubr.f32.gmra.mrb[0].mxu0 %v108
    %v197 = vpop.f32.mrb[0].mxu0
    %v198 = vadd.f32 0.0, %v197
    %v199 = vpop.f32.mrb[0].mxu0
    %200 = vmatprep.mubr.f32.mxu0 0.0
    %201 = vmatmul.mubr.f32.gmra.mrb[0].mxu0 %v111
    %v202 = vpop.f32.mrb[0].mxu0
    %v203 = vadd.f32 0.0, %v202
    %v204 = vpop.f32.mrb[0].mxu0
    %205 = vmatprep.mubr.f32.mxu0 0.0
    %206 = vmatmul.mubr.f32.gmra.mrb[0].mxu0 %v114
    %v207 = vpop.f32.mrb[0].mxu0
    %v208 = vadd.f32 0.0, %v207
    %v209 = vpop.f32.mrb[0].mxu0
    %210 = vmatprep.mubr.f32.mxu0 0.0
    %211 = vmatmul.mubr.f32.gmra.mrb[0].mxu0 %v117
    %v212 = vpop.f32.mrb[0].mxu0
    %v213 = vadd.f32 0.0, %v212
    %v214 = vpop.f32.mrb[0].mxu0
    %215 = vmatprep.mubr.f32.mxu0 0.0
    %216 = vmatmul.mubr.f32.gmra.mrb[0].mxu0 %v120
    %v217 = vpop.f32.mrb[0].mxu0
    %v218 = vadd.f32 0.0, %v217
    %v219 = vpop.f32.mrb[0].mxu0
    %220 = vmatprep.mubr.f32.mxu0 0.0
    %221 = vmatmul.mubr.f32.gmra.mrb[0].mxu0 %v123
    %v222 = vpop.f32.mrb[0].mxu0
    %v223 = vadd.f32 0.0, %v222
    %v224 = vpop.f32.mrb[0].mxu0
    %225 = vmatprep.mubr.f32.mxu0 0.0
    %226 = vmatmul.mubr.f32.gmra.mrb[0].mxu0 %v126
    %v227 = vpop.f32.mrb[0].mxu0
    %v228 = vadd.f32 0.0, %v227
    %v229 = vpop.f32.mrb[0].mxu0
    %230 = vmatprep.mubr.f32.mxu0 0.0
    %231 = vmatmul.mubr.f32.gmra.mrb[0].mxu0 %v129
    %v232 = vpop.f32.mrb[0].mxu0
    %v233 = vadd.f32 0.0, %v232
    %v234 = vpop.f32.mrb[0].mxu0
    %235 = vdwg.mxu0
    %vm236 = vcmask 64512
    %v238 = vsel %vm236, %v198, 0
    %v241 = vsel %vm236, %v203, 0
    %v244 = vsel %vm236, %v208, 0
    %v247 = vsel %vm236, %v213, 0
    %v250 = vsel %vm236, %v218, 0
    %v253 = vsel %vm236, %v223, 0
    %v256 = vsel %vm236, %v228, 0
    %v259 = vsel %vm236, %v233, 0
    %261 = vmatprep.subr.mxu0 0.0
    %262 = vmatpush1.msra.mxu0 %v30
    %263 = vmatprep.subr.mxu0 0.0
    %264 = vmatpush1.msra.mxu0 0.0
    %265 = vmatprep.subr.mxu0 0.0
    %266 = vmatpush1.msra.mxu0 0.0
    %267 = vmatprep.subr.mxu0 0.0
    %268 = vmatpush1.msra.mxu0 0.0
    %269 = vmatprep.subr.mxu0 0.0
    %270 = vmatpush1.msra.mxu0 0.0
    %271 = vmatprep.subr.mxu0 0.0
    %272 = vmatpush1.msra.mxu0 0.0
    %273 = vmatprep.subr.mxu0 0.0
    %274 = vmatpush1.msra.mxu0 0.0
    %275 = vmatprep.subr.mxu0 0.0
    %276 = vmatpush1.msra.mxu0 0.0
    %277 = vmatprep.subr.mxu0 0.0
    %278 = vmatpush1.msra.mxu0 0.0
    %279 = vmatprep.subr.mxu0 0.0
    %280 = vmatpush1.msra.mxu0 0.0
    %281 = vmatprep.subr.mxu0 0.0
    %282 = vmatpush1.msra.mxu0 0.0
    %283 = vmatprep.subr.mxu0 0.0
    %284 = vmatpush1.msra.mxu0 0.0
    %285 = vmatprep.subr.mxu0 0.0
    %286 = vmatpush1.msra.mxu0 0.0
    %287 = vmatprep.subr.mxu0 0.0
    %288 = vmatpush1.msra.mxu0 0.0
    %289 = vmatprep.subr.mxu0 0.0
    %290 = vmatpush1.msra.mxu0 0.0
    %291 = vmatprep.subr.mxu0 0.0
    %292 = vmatpush1.msra.mxu0 0.0
    %293 = vmatprep.subr.mxu0 0.0
    %294 = vmatpush1.msra.mxu0 0.0
    %295 = vmatprep.subr.mxu0 0.0
    %296 = vmatpush1.msra.mxu0 0.0
    %297 = vmatprep.subr.mxu0 0.0
    %298 = vmatpush1.msra.mxu0 0.0
    %299 = vmatprep.subr.mxu0 0.0
    %300 = vmatpush1.msra.mxu0 0.0
    %301 = vmatprep.subr.mxu0 0.0
    %302 = vmatpush1.msra.mxu0 0.0
    %303 = vmatprep.subr.mxu0 0.0
    %304 = vmatpush1.msra.mxu0 0.0
    %305 = vmatprep.subr.mxu0 0.0
    %306 = vmatpush1.msra.mxu0 0.0
    %307 = vmatprep.subr.mxu0 0.0
    %308 = vmatpush1.msra.mxu0 0.0
    %309 = vmatprep.subr.mxu0 0.0
    %310 = vmatpush1.msra.mxu0 0.0
    %311 = vmatprep.subr.mxu0 0.0
    %312 = vmatpush1.msra.mxu0 0.0
    %313 = vmatprep.subr.mxu0 0.0
    %314 = vmatpush1.msra.mxu0 0.0
    %315 = vmatprep.subr.mxu0 0.0
    %316 = vmatpush1.msra.mxu0 0.0
    %317 = vmatprep.subr.mxu0 0.0
    %318 = vmatpush1.msra.mxu0 0.0
    %319 = vmatprep.subr.mxu0 0.0
    %320 = vmatpush1.msra.mxu0 0.0
    %321 = vmatprep.subr.mxu0 0.0
    %322 = vmatpush1.msra.mxu0 0.0
    %323 = vmatprep.subr.mxu0 0.0
    %324 = vmatpush1.msra.mxu0 0.0
    %325 = vmatprep.mubr.f32.mxu0 0.0
    %326 = vmatmul.mubr.f32.gmra.mrb[0].mxu0 %v238
    %v327 = vpop.f32.mrb[0].mxu0
    %v328 = vadd.f32 0.0, %v327
    %v329 = vpop.f32.mrb[0].mxu0
    %330 = vmatprep.mubr.f32.mxu0 0.0
    %331 = vmatmul.mubr.f32.gmra.mrb[0].mxu0 %v241
    %v332 = vpop.f32.mrb[0].mxu0
    %v333 = vadd.f32 0.0, %v332
    %v334 = vpop.f32.mrb[0].mxu0
    %335 = vmatprep.mubr.f32.mxu0 0.0
    %336 = vmatmul.mubr.f32.gmra.mrb[0].mxu0 %v244
    %v337 = vpop.f32.mrb[0].mxu0
    %v338 = vadd.f32 0.0, %v337
    %v339 = vpop.f32.mrb[0].mxu0
    %340 = vmatprep.mubr.f32.mxu0 0.0
    %341 = vmatmul.mubr.f32.gmra.mrb[0].mxu0 %v247
    %v342 = vpop.f32.mrb[0].mxu0
    %v343 = vadd.f32 0.0, %v342
    %v344 = vpop.f32.mrb[0].mxu0
    %345 = vmatprep.mubr.f32.mxu0 0.0
    %346 = vmatmul.mubr.f32.gmra.mrb[0].mxu0 %v250
    %v347 = vpop.f32.mrb[0].mxu0
    %v348 = vadd.f32 0.0, %v347
    %v349 = vpop.f32.mrb[0].mxu0
    %350 = vmatprep.mubr.f32.mxu0 0.0
    %351 = vmatmul.mubr.f32.gmra.mrb[0].mxu0 %v253
    %v352 = vpop.f32.mrb[0].mxu0
    %v353 = vadd.f32 0.0, %v352
    %v354 = vpop.f32.mrb[0].mxu0
    %355 = vmatprep.mubr.f32.mxu0 0.0
    %356 = vmatmul.mubr.f32.gmra.mrb[0].mxu0 %v256
    %v357 = vpop.f32.mrb[0].mxu0
    %v358 = vadd.f32 0.0, %v357
    %v359 = vpop.f32.mrb[0].mxu0
    %360 = vmatprep.mubr.f32.mxu0 0.0
    %361 = vmatmul.mubr.f32.gmra.mrb[0].mxu0 %v259
    %v362 = vpop.f32.mrb[0].mxu0
    %v363 = vadd.f32 0.0, %v362
    %v364 = vpop.f32.mrb[0].mxu0
    %365 = vdwg.mxu0
    %v366 = vld [vmem:[%s3] sm:$0xff]
    %v367 = vld [vmem:[%s3 + $0x8] sm:$0xff]
    %v368 = vld [vmem:[%s3 + $0x10] sm:$0xff]
    %v369 = vld [vmem:[%s3 + $0x18] sm:$0xff]
    %vm370 = vcmask 195584
    %v372 = vsel %vm370, %v366, 0
    %v375 = vsel %vm370, %v367, 0
    %v378 = vsel %vm370, %v368, 0
    %v381 = vsel %vm370, %v369, 0
    %383 = vmatprep.subr.mxu0 0.0
    %384 = vmatpush1.msra.mxu0 %v21
    %385 = vmatprep.subr.mxu0 0.0
    %386 = vmatpush1.msra.mxu0 %v22
    %387 = vmatprep.subr.mxu0 0.0
    %388 = vmatpush1.msra.mxu0 %v23
    %389 = vmatprep.subr.mxu0 0.0
    %390 = vmatpush1.msra.mxu0 0.0
    %391 = vmatprep.subr.mxu0 0.0
    %392 = vmatpush1.msra.mxu0 0.0
    %393 = vmatprep.subr.mxu0 0.0
    %394 = vmatpush1.msra.mxu0 0.0
    %395 = vmatprep.subr.mxu0 0.0
    %396 = vmatpush1.msra.mxu0 0.0
    %397 = vmatprep.subr.mxu0 0.0
    %398 = vmatpush1.msra.mxu0 0.0
    %399 = vmatprep.subr.mxu0 0.0
    %400 = vmatpush1.msra.mxu0 0.0
    %401 = vmatprep.subr.mxu0 0.0
    %402 = vmatpush1.msra.mxu0 0.0
    %403 = vmatprep.subr.mxu0 0.0
    %404 = vmatpush1.msra.mxu0 0.0
    %405 = vmatprep.subr.mxu0 0.0
    %406 = vmatpush1.msra.mxu0 0.0
    %407 = vmatprep.subr.mxu0 0.0
    %408 = vmatpush1.msra.mxu0 0.0
    %409 = vmatprep.subr.mxu0 0.0
    %410 = vmatpush1.msra.mxu0 0.0
    %411 = vmatprep.subr.mxu0 0.0
    %412 = vmatpush1.msra.mxu0 0.0
    %413 = vmatprep.subr.mxu0 0.0
    %414 = vmatpush1.msra.mxu0 0.0
    %415 = vmatprep.subr.mxu0 0.0
    %416 = vmatpush1.msra.mxu0 0.0
    %417 = vmatprep.subr.mxu0 0.0
    %418 = vmatpush1.msra.mxu0 0.0
    %419 = vmatprep.subr.mxu0 0.0
    %420 = vmatpush1.msra.mxu0 0.0
    %421 = vmatprep.subr.mxu0 0.0
    %422 = vmatpush1.msra.mxu0 0.0
    %423 = vmatprep.subr.mxu0 0.0
    %424 = vmatpush1.msra.mxu0 0.0
    %425 = vmatprep.subr.mxu0 0.0
    %426 = vmatpush1.msra.mxu0 0.0
    %427 = vmatprep.subr.mxu0 0.0
    %428 = vmatpush1.msra.mxu0 0.0
    %429 = vmatprep.subr.mxu0 0.0
    %430 = vmatpush1.msra.mxu0 0.0
    %431 = vmatprep.subr.mxu0 0.0
    %432 = vmatpush1.msra.mxu0 0.0
    %433 = vmatprep.subr.mxu0 0.0
    %434 = vmatpush1.msra.mxu0 0.0
    %435 = vmatprep.subr.mxu0 0.0
    %436 = vmatpush1.msra.mxu0 0.0
    %437 = vmatprep.subr.mxu0 0.0
    %438 = vmatpush1.msra.mxu0 0.0
    %439 = vmatprep.subr.mxu0 0.0
    %440 = vmatpush1.msra.mxu0 0.0
    %441 = vmatprep.subr.mxu0 0.0
    %442 = vmatpush1.msra.mxu0 0.0
    %443 = vmatprep.subr.mxu0 0.0
    %444 = vmatpush1.msra.mxu0 0.0
    %445 = vmatprep.subr.mxu0 0.0
    %446 = vmatpush1.msra.mxu0 0.0
    %447 = vmatprep.mubr.f32.mxu0 0.0
    %448 = vmatmul.mubr.f32.gmra.mrb[0].mxu0 %v372
    %v449 = vpop.f32.mrb[0].mxu0
    %v450 = vadd.f32 0.0, %v449
    %v451 = vpop.f32.mrb[0].mxu0
    %452 = vmatprep.mubr.f32.mxu0 0.0
    %453 = vmatmul.mubr.f32.gmra.mrb[0].mxu0 %v375
    %v454 = vpop.f32.mrb[0].mxu0
    %v455 = vadd.f32 0.0, %v454
    %v456 = vpop.f32.mrb[0].mxu0
    %457 = vmatprep.mubr.f32.mxu0 0.0
    %458 = vmatmul.mubr.f32.gmra.mrb[0].mxu0 %v378
    %v459 = vpop.f32.mrb[0].mxu0
    %v460 = vadd.f32 0.0, %v459
    %v461 = vpop.f32.mrb[0].mxu0
    %462 = vmatprep.mubr.f32.mxu0 0.0
    %463 = vmatmul.mubr.f32.gmra.mrb[0].mxu0 %v381
    %v464 = vpop.f32.mrb[0].mxu0
    %v465 = vadd.f32 0.0, %v464
    %v466 = vpop.f32.mrb[0].mxu0
    %467 = vdwg.mxu0
    %v468 = vmax.f32 %v450, 0.0
    %v469 = vmax.f32 %v455, 0.0
    %v470 = vmax.f32 %v460, 0.0
    %v471 = vmax.f32 %v465, 0.0
    %v473 = vsel %vm370, %v468, 0
    %v476 = vsel %vm370, %v469, 0
    %v479 = vsel %vm370, %v470, 0
    %v482 = vsel %vm370, %v471, 0
    %484 = vmatprep.subr.mxu0 0.0
    %485 = vmatpush1.msra.mxu0 %v24
    %486 = vmatprep.subr.mxu0 0.0
    %487 = vmatpush1.msra.mxu0 %v25
    %488 = vmatprep.subr.mxu0 0.0
    %489 = vmatpush1.msra.mxu0 %v26
    %490 = vmatprep.subr.mxu0 0.0
    %491 = vmatpush1.msra.mxu0 0.0
    %492 = vmatprep.subr.mxu0 0.0
    %493 = vmatpush1.msra.mxu0 0.0
    %494 = vmatprep.subr.mxu0 0.0
    %495 = vmatpush1.msra.mxu0 0.0
    %496 = vmatprep.subr.mxu0 0.0
    %497 = vmatpush1.msra.mxu0 0.0
    %498 = vmatprep.subr.mxu0 0.0
    %499 = vmatpush1.msra.mxu0 0.0
    %500 = vmatprep.subr.mxu0 0.0
    %501 = vmatpush1.msra.mxu0 0.0
    %502 = vmatprep.subr.mxu0 0.0
    %503 = vmatpush1.msra.mxu0 0.0
    %504 = vmatprep.subr.mxu0 0.0
    %505 = vmatpush1.msra.mxu0 0.0
    %506 = vmatprep.subr.mxu0 0.0
    %507 = vmatpush1.msra.mxu0 0.0
    %508 = vmatprep.subr.mxu0 0.0
    %509 = vmatpush1.msra.mxu0 0.0
    %510 = vmatprep.subr.mxu0 0.0
    %511 = vmatpush1.msra.mxu0 0.0
    %512 = vmatprep.subr.mxu0 0.0
    %513 = vmatpush1.msra.mxu0 0.0
    %514 = vmatprep.subr.mxu0 0.0
    %515 = vmatpush1.msra.mxu0 0.0
    %516 = vmatprep.subr.mxu0 0.0
    %517 = vmatpush1.msra.mxu0 0.0
    %518 = vmatprep.subr.mxu0 0.0
    %519 = vmatpush1.msra.mxu0 0.0
    %520 = vmatprep.subr.mxu0 0.0
    %521 = vmatpush1.msra.mxu0 0.0
    %522 = vmatprep.subr.mxu0 0.0
    %523 = vmatpush1.msra.mxu0 0.0
    %524 = vmatprep.subr.mxu0 0.0
    %525 = vmatpush1.msra.mxu0 0.0
    %526 = vmatprep.subr.mxu0 0.0
    %527 = vmatpush1.msra.mxu0 0.0
    %528 = vmatprep.subr.mxu0 0.0
    %529 = vmatpush1.msra.mxu0 0.0
    %530 = vmatprep.subr.mxu0 0.0
    %531 = vmatpush1.msra.mxu0 0.0
    %532 = vmatprep.subr.mxu0 0.0
    %533 = vmatpush1.msra.mxu0 0.0
    %534 = vmatprep.subr.mxu0 0.0
    %535 = vmatpush1.msra.mxu0 0.0
    %536 = vmatprep.subr.mxu0 0.0
    %537 = vmatpush1.msra.mxu0 0.0
    %538 = vmatprep.subr.mxu0 0.0
    %539 = vmatpush1.msra.mxu0 0.0
    %540 = vmatprep.subr.mxu0 0.0
    %541 = vmatpush1.msra.mxu0 0.0
    %542 = vmatprep.subr.mxu0 0.0
    %543 = vmatpush1.msra.mxu0 0.0
    %544 = vmatprep.subr.mxu0 0.0
    %545 = vmatpush1.msra.mxu0 0.0
    %546 = vmatprep.subr.mxu0 0.0
    %547 = vmatpush1.msra.mxu0 0.0
    %548 = vmatprep.mubr.f32.mxu0 0.0
    %549 = vmatmul.mubr.f32.gmra.mrb[0].mxu0 %v473
    %v550 = vpop.f32.mrb[0].mxu0
    %v551 = vadd.f32 0.0, %v550
    %v552 = vpop.f32.mrb[0].mxu0
    %553 = vmatprep.mubr.f32.mxu0 0.0
    %554 = vmatmul.mubr.f32.gmra.mrb[0].mxu0 %v476
    %v555 = vpop.f32.mrb[0].mxu0
    %v556 = vadd.f32 0.0, %v555
    %v557 = vpop.f32.mrb[0].mxu0
    %558 = vmatprep.mubr.f32.mxu0 0.0
    %559 = vmatmul.mubr.f32.gmra.mrb[0].mxu0 %v479
    %v560 = vpop.f32.mrb[0].mxu0
    %v561 = vadd.f32 0.0, %v560
    %v562 = vpop.f32.mrb[0].mxu0
    %563 = vmatprep.mubr.f32.mxu0 0.0
    %564 = vmatmul.mubr.f32.gmra.mrb[0].mxu0 %v482
    %v565 = vpop.f32.mrb[0].mxu0
    %v566 = vadd.f32 0.0, %v565
    %v567 = vpop.f32.mrb[0].mxu0
    %568 = vdwg.mxu0
    %569 = vmatprep.subr.mxu0 0.0
    %570 = vmatpush1.msra.mxu0 %v27
    %571 = vmatprep.subr.mxu0 0.0
    %572 = vmatpush1.msra.mxu0 %v28
    %573 = vmatprep.subr.mxu0 0.0
    %574 = vmatpush1.msra.mxu0 %v29
    %575 = vmatprep.subr.mxu0 0.0
    %576 = vmatpush1.msra.mxu0 0.0
    %577 = vmatprep.subr.mxu0 0.0
    %578 = vmatpush1.msra.mxu0 0.0
    %579 = vmatprep.subr.mxu0 0.0
    %580 = vmatpush1.msra.mxu0 0.0
    %581 = vmatprep.subr.mxu0 0.0
    %582 = vmatpush1.msra.mxu0 0.0
    %583 = vmatprep.subr.mxu0 0.0
    %584 = vmatpush1.msra.mxu0 0.0
    %585 = vmatprep.subr.mxu0 0.0
    %586 = vmatpush1.msra.mxu0 0.0
    %587 = vmatprep.subr.mxu0 0.0
    %588 = vmatpush1.msra.mxu0 0.0
    %589 = vmatprep.subr.mxu0 0.0
    %590 = vmatpush1.msra.mxu0 0.0
    %591 = vmatprep.subr.mxu0 0.0
    %592 = vmatpush1.msra.mxu0 0.0
    %593 = vmatprep.subr.mxu0 0.0
    %594 = vmatpush1.msra.mxu0 0.0
    %595 = vmatprep.subr.mxu0 0.0
    %596 = vmatpush1.msra.mxu0 0.0
    %597 = vmatprep.subr.mxu0 0.0
    %598 = vmatpush1.msra.mxu0 0.0
    %599 = vmatprep.subr.mxu0 0.0
    %600 = vmatpush1.msra.mxu0 0.0
    %601 = vmatprep.subr.mxu0 0.0
    %602 = vmatpush1.msra.mxu0 0.0
    %603 = vmatprep.subr.mxu0 0.0
    %604 = vmatpush1.msra.mxu0 0.0
    %605 = vmatprep.subr.mxu0 0.0
    %606 = vmatpush1.msra.mxu0 0.0
    %607 = vmatprep.subr.mxu0 0.0
    %608 = vmatpush1.msra.mxu0 0.0
    %609 = vmatprep.subr.mxu0 0.0
    %610 = vmatpush1.msra.mxu0 0.0
    %611 = vmatprep.subr.mxu0 0.0
    %612 = vmatpush1.msra.mxu0 0.0
    %613 = vmatprep.subr.mxu0 0.0
    %614 = vmatpush1.msra.mxu0 0.0
    %615 = vmatprep.subr.mxu0 0.0
    %616 = vmatpush1.msra.mxu0 0.0
    %617 = vmatprep.subr.mxu0 0.0
    %618 = vmatpush1.msra.mxu0 0.0
    %619 = vmatprep.subr.mxu0 0.0
    %620 = vmatpush1.msra.mxu0 0.0
    %621 = vmatprep.subr.mxu0 0.0
    %622 = vmatpush1.msra.mxu0 0.0
    %623 = vmatprep.subr.mxu0 0.0
    %624 = vmatpush1.msra.mxu0 0.0
    %625 = vmatprep.subr.mxu0 0.0
    %626 = vmatpush1.msra.mxu0 0.0
    %627 = vmatprep.subr.mxu0 0.0
    %628 = vmatpush1.msra.mxu0 0.0
    %629 = vmatprep.subr.mxu0 0.0
    %630 = vmatpush1.msra.mxu0 0.0
    %631 = vmatprep.subr.mxu0 0.0
    %632 = vmatpush1.msra.mxu0 0.0
    %633 = vmatprep.mubr.f32.mxu0 0.0
    %634 = vmatmul.mubr.f32.gmra.mrb[0].mxu0 %v372
    %v635 = vpop.f32.mrb[0].mxu0
    %v636 = vadd.f32 0.0, %v635
    %v637 = vpop.f32.mrb[0].mxu0
    %638 = vmatprep.mubr.f32.mxu0 0.0
    %639 = vmatmul.mubr.f32.gmra.mrb[0].mxu0 %v375
    %v640 = vpop.f32.mrb[0].mxu0
    %v641 = vadd.f32 0.0, %v640
    %v642 = vpop.f32.mrb[0].mxu0
    %643 = vmatprep.mubr.f32.mxu0 0.0
    %644 = vmatmul.mubr.f32.gmra.mrb[0].mxu0 %v378
    %v645 = vpop.f32.mrb[0].mxu0
    %v646 = vadd.f32 0.0, %v645
    %v647 = vpop.f32.mrb[0].mxu0
    %648 = vmatprep.mubr.f32.mxu0 0.0
    %649 = vmatmul.mubr.f32.gmra.mrb[0].mxu0 %v381
    %v650 = vpop.f32.mrb[0].mxu0
    %v651 = vadd.f32 0.0, %v650
    %v652 = vpop.f32.mrb[0].mxu0
    %653 = vdwg.mxu0
    %v654 = vmul.f32 %v328, %v551
    %v655 = vmul.f32 %v333, %v556
    %v656 = vmul.f32 %v338, %v561
    %v657 = vmul.f32 %v343, %v566
    %v658 = vmul.f32 %v348, %v551
    %v659 = vmul.f32 %v353, %v556
    %v660 = vmul.f32 %v358, %v561
    %v661 = vmul.f32 %v363, %v566
    %vm662 = vcmask 785408
    %v664 = vsel %vm662, %v654, 0
    %v667 = vsel %vm662, %v655, 0
    %v670 = vsel %vm662, %v656, 0
    %v673 = vsel %vm662, %v657, 0
    %v676 = vsel %vm662, %v658, 0
    %v679 = vsel %vm662, %v659, 0
    %v682 = vsel %vm662, %v660, 0
    %v685 = vsel %vm662, %v661, 0
    %687 = vmatprep.subr.mxu0 0.0
    %688 = vmatpush1.msra.mxu0 %v31
    %689 = vmatprep.subr.mxu0 0.0
    %690 = vmatpush1.msra.mxu0 %v32
    %691 = vmatprep.subr.mxu0 0.0
    %692 = vmatpush1.msra.mxu0 %v33
    %693 = vmatprep.subr.mxu0 0.0
    %694 = vmatpush1.msra.mxu0 %v34
    %695 = vmatprep.subr.mxu0 0.0
    %696 = vmatpush1.msra.mxu0 %v35
    %697 = vmatprep.subr.mxu0 0.0
    %698 = vmatpush1.msra.mxu0 %v36
    %699 = vmatprep.subr.mxu0 0.0
    %700 = vmatpush1.msra.mxu0 %v37
    %701 = vmatprep.subr.mxu0 0.0
    %702 = vmatpush1.msra.mxu0 %v38
    %703 = vmatprep.subr.mxu0 0.0
    %704 = vmatpush1.msra.mxu0 %v39
    %705 = vmatprep.subr.mxu0 0.0
    %706 = vmatpush1.msra.mxu0 %v40
    %707 = vmatprep.subr.mxu0 0.0
    %708 = vmatpush1.msra.mxu0 %v41
    %709 = vmatprep.subr.mxu0 0.0
    %710 = vmatpush1.msra.mxu0 %v42
    %711 = vmatprep.subr.mxu0 0.0
    %712 = vmatpush1.msra.mxu0 0.0
    %713 = vmatprep.subr.mxu0 0.0
    %714 = vmatpush1.msra.mxu0 0.0
    %715 = vmatprep.subr.mxu0 0.0
    %716 = vmatpush1.msra.mxu0 0.0
    %717 = vmatprep.subr.mxu0 0.0
    %718 = vmatpush1.msra.mxu0 0.0
    %719 = vmatprep.subr.mxu0 0.0
    %720 = vmatpush1.msra.mxu0 0.0
    %721 = vmatprep.subr.mxu0 0.0
    %722 = vmatpush1.msra.mxu0 0.0
    %723 = vmatprep.subr.mxu0 0.0
    %724 = vmatpush1.msra.mxu0 0.0
    %725 = vmatprep.subr.mxu0 0.0
    %726 = vmatpush1.msra.mxu0 0.0
    %727 = vmatprep.subr.mxu0 0.0
    %728 = vmatpush1.msra.mxu0 0.0
    %729 = vmatprep.subr.mxu0 0.0
    %730 = vmatpush1.msra.mxu0 0.0
    %731 = vmatprep.subr.mxu0 0.0
    %732 = vmatpush1.msra.mxu0 0.0
    %733 = vmatprep.subr.mxu0 0.0
    %734 = vmatpush1.msra.mxu0 0.0
    %735 = vmatprep.subr.mxu0 0.0
    %736 = vmatpush1.msra.mxu0 0.0
    %737 = vmatprep.subr.mxu0 0.0
    %738 = vmatpush1.msra.mxu0 0.0
    %739 = vmatprep.subr.mxu0 0.0
    %740 = vmatpush1.msra.mxu0 0.0
    %741 = vmatprep.subr.mxu0 0.0
    %742 = vmatpush1.msra.mxu0 0.0
    %743 = vmatprep.subr.mxu0 0.0
    %744 = vmatpush1.msra.mxu0 0.0
    %745 = vmatprep.subr.mxu0 0.0
    %746 = vmatpush1.msra.mxu0 0.0
    %747 = vmatprep.subr.mxu0 0.0
    %748 = vmatpush1.msra.mxu0 0.0
    %749 = vmatprep.subr.mxu0 0.0
    %750 = vmatpush1.msra.mxu0 0.0
    %751 = vmatprep.mubr.f32.mxu0 0.0
    %752 = vmatmul.mubr.f32.gmra.mrb[0].mxu0 %v664
    %v753 = vpop.f32.mrb[0].mxu0
    %v754 = vadd.f32 0.0, %v753
    %v755 = vpop.f32.mrb[0].mxu0
    %756 = vmatprep.mubr.f32.mxu0 0.0
    %757 = vmatmul.mubr.f32.gmra.mrb[0].mxu0 %v667
    %v758 = vpop.f32.mrb[0].mxu0
    %v759 = vadd.f32 0.0, %v758
    %v760 = vpop.f32.mrb[0].mxu0
    %761 = vmatprep.mubr.f32.mxu0 0.0
    %762 = vmatmul.mubr.f32.gmra.mrb[0].mxu0 %v670
    %v763 = vpop.f32.mrb[0].mxu0
    %v764 = vadd.f32 0.0, %v763
    %v765 = vpop.f32.mrb[0].mxu0
    %766 = vmatprep.mubr.f32.mxu0 0.0
    %767 = vmatmul.mubr.f32.gmra.mrb[0].mxu0 %v673
    %v768 = vpop.f32.mrb[0].mxu0
    %v769 = vadd.f32 0.0, %v768
    %v770 = vpop.f32.mrb[0].mxu0
    %771 = vmatprep.mubr.f32.mxu0 0.0
    %772 = vmatmul.mubr.f32.gmra.mrb[0].mxu0 %v676
    %v773 = vpop.f32.mrb[0].mxu0
    %v774 = vadd.f32 0.0, %v773
    %v775 = vpop.f32.mrb[0].mxu0
    %776 = vmatprep.mubr.f32.mxu0 0.0
    %777 = vmatmul.mubr.f32.gmra.mrb[0].mxu0 %v679
    %v778 = vpop.f32.mrb[0].mxu0
    %v779 = vadd.f32 0.0, %v778
    %v780 = vpop.f32.mrb[0].mxu0
    %781 = vmatprep.mubr.f32.mxu0 0.0
    %782 = vmatmul.mubr.f32.gmra.mrb[0].mxu0 %v682
    %v783 = vpop.f32.mrb[0].mxu0
    %v784 = vadd.f32 0.0, %v783
    %v785 = vpop.f32.mrb[0].mxu0
    %786 = vmatprep.mubr.f32.mxu0 0.0
    %787 = vmatmul.mubr.f32.gmra.mrb[0].mxu0 %v685
    %v788 = vpop.f32.mrb[0].mxu0
    %v789 = vadd.f32 0.0, %v788
    %v790 = vpop.f32.mrb[0].mxu0
    %791 = vdwg.mxu0
    %v792 = vmul.f32 %v754, %v636
    %v793 = vmul.f32 %v759, %v641
    %v794 = vmul.f32 %v764, %v646
    %v795 = vmul.f32 %v769, %v651
    %v796 = vmul.f32 %v774, %v636
    %v797 = vmul.f32 %v779, %v641
    %v798 = vmul.f32 %v784, %v646
    %v799 = vmul.f32 %v789, %v651
    %v800 = vlaneseq
    %v801 = vshrl.u32 %v800, 7
    %v802 = vadd.s32 %v801, 8
    %v803 = vadd.s32 %v801, 16
    %v804 = vadd.s32 %v801, 24
    %v805 = vld [vmem:[%s2] sm:$0x1]
    %v806 = vlaneseq
    %v807 = vshrl.u32 %v806, 7
    %v808 = vsub.s32 0, %v807
    %v809 = vrot.slane %v805, %v808
    %vm810 = vcmp.eq.s32.totalorder %v801, %v809
    %vm811 = vcmp.eq.s32.totalorder %v802, %v809
    %vm812 = vcmp.eq.s32.totalorder %v803, %v809
    %vm813 = vcmp.eq.s32.totalorder %v804, %v809
    %v814 = vsel %vm810, 1, 0
    %v815 = vsel %vm811, 1, 0
    %v816 = vsel %vm812, 1, 0
    %v817 = vsel %vm813, 1, 0
    %v818 = vcvt.s32.f32 %v814
    %v819 = vcvt.s32.f32 %v815
    %v820 = vcvt.s32.f32 %v816
    %v821 = vcvt.s32.f32 %v817
    %vm822 = vcmask 523264
    %v824 = vsel %vm822, %v818, 0
    %v827 = vsel %vm822, %v819, 0
    %v830 = vsel %vm822, %v820, 0
    %v833 = vsel %vm822, %v821, 0
    %835 = vmatprep.subr.mxu0 0.0
    %836 = vmatpush1.msra.mxu0 %v792
    %837 = vmatprep.subr.mxu0 0.0
    %838 = vmatpush1.msra.mxu0 %v793
    %839 = vmatprep.subr.mxu0 0.0
    %840 = vmatpush1.msra.mxu0 %v794
    %841 = vmatprep.subr.mxu0 0.0
    %842 = vmatpush1.msra.mxu0 %v795
    %843 = vmatprep.subr.mxu0 0.0
    %844 = vmatpush1.msra.mxu0 %v796
    %845 = vmatprep.subr.mxu0 0.0
    %846 = vmatpush1.msra.mxu0 %v797
    %847 = vmatprep.subr.mxu0 0.0
    %848 = vmatpush1.msra.mxu0 %v798
    %849 = vmatprep.subr.mxu0 0.0
    %850 = vmatpush1.msra.mxu0 %v799
    %851 = vmatprep.subr.mxu0 0.0
    %852 = vmatpush1.msra.mxu0 0.0
    %853 = vmatprep.subr.mxu0 0.0
    %854 = vmatpush1.msra.mxu0 0.0
    %855 = vmatprep.subr.mxu0 0.0
    %856 = vmatpush1.msra.mxu0 0.0
    %857 = vmatprep.subr.mxu0 0.0
    %858 = vmatpush1.msra.mxu0 0.0
    %859 = vmatprep.subr.mxu0 0.0
    %860 = vmatpush1.msra.mxu0 0.0
    %861 = vmatprep.subr.mxu0 0.0
    %862 = vmatpush1.msra.mxu0 0.0
    %863 = vmatprep.subr.mxu0 0.0
    %864 = vmatpush1.msra.mxu0 0.0
    %865 = vmatprep.subr.mxu0 0.0
    %866 = vmatpush1.msra.mxu0 0.0
    %867 = vmatprep.subr.mxu0 0.0
    %868 = vmatpush1.msra.mxu0 0.0
    %869 = vmatprep.subr.mxu0 0.0
    %870 = vmatpush1.msra.mxu0 0.0
    %871 = vmatprep.subr.mxu0 0.0
    %872 = vmatpush1.msra.mxu0 0.0
    %873 = vmatprep.subr.mxu0 0.0
    %874 = vmatpush1.msra.mxu0 0.0
    %875 = vmatprep.subr.mxu0 0.0
    %876 = vmatpush1.msra.mxu0 0.0
    %877 = vmatprep.subr.mxu0 0.0
    %878 = vmatpush1.msra.mxu0 0.0
    %879 = vmatprep.subr.mxu0 0.0
    %880 = vmatpush1.msra.mxu0 0.0
    %881 = vmatprep.subr.mxu0 0.0
    %882 = vmatpush1.msra.mxu0 0.0
    %883 = vmatprep.subr.mxu0 0.0
    %884 = vmatpush1.msra.mxu0 0.0
    %885 = vmatprep.subr.mxu0 0.0
    %886 = vmatpush1.msra.mxu0 0.0
    %887 = vmatprep.subr.mxu0 0.0
    %888 = vmatpush1.msra.mxu0 0.0
    %889 = vmatprep.subr.mxu0 0.0
    %890 = vmatpush1.msra.mxu0 0.0
    %891 = vmatprep.subr.mxu0 0.0
    %892 = vmatpush1.msra.mxu0 0.0
    %893 = vmatprep.subr.mxu0 0.0
    %894 = vmatpush1.msra.mxu0 0.0
    %895 = vmatprep.subr.mxu0 0.0
    %896 = vmatpush1.msra.mxu0 0.0
    %897 = vmatprep.subr.mxu0 0.0
    %898 = vmatpush1.msra.mxu0 0.0
    %899 = vmatprep.mubr.f32.mxu0 0.0
    %900 = vmatmul.mubr.f32.gmra.mrb[0].mxu0 %v824
    %v901 = vpop.f32.mrb[0].mxu0
    %v902 = vadd.f32 0.0, %v901
    %v903 = vpop.f32.mrb[0].mxu0
    %904 = vmatprep.mubr.f32.mxu0 0.0
    %905 = vmatmul.mubr.f32.gmra.mrb[0].mxu0 %v827
    %v906 = vpop.f32.mrb[0].mxu0
    %v907 = vadd.f32 0.0, %v906
    %v908 = vpop.f32.mrb[0].mxu0
    %909 = vmatprep.mubr.f32.mxu0 0.0
    %910 = vmatmul.mubr.f32.gmra.mrb[0].mxu0 %v830
    %v911 = vpop.f32.mrb[0].mxu0
    %v912 = vadd.f32 0.0, %v911
    %v913 = vpop.f32.mrb[0].mxu0
    %914 = vmatprep.mubr.f32.mxu0 0.0
    %915 = vmatmul.mubr.f32.gmra.mrb[0].mxu0 %v833
    %v916 = vpop.f32.mrb[0].mxu0
    %v917 = vadd.f32 0.0, %v916
    %v918 = vpop.f32.mrb[0].mxu0
    %919 = vdwg.mxu0
    %v920 = vsel %vm822, %v818, 0.0
    %921 = vadd.xlane.f32.xlu0 %v920
    %v922 = vpop.xlane.xlu0 %921
    %v923 = vsel %vm822, %v819, 0.0
    %924 = vadd.xlane.f32.xlu0 %v923
    %v925 = vpop.xlane.xlu0 %924
    %v926 = vsel %vm822, %v820, 0.0
    %927 = vadd.xlane.f32.xlu0 %v926
    %v928 = vpop.xlane.xlu0 %927
    %v929 = vsel %vm822, %v821, 0.0
    %930 = vadd.xlane.f32.xlu0 %v929
    %v931 = vpop.xlane.xlu0 %930
    %v932 = vmax.f32 %v922, 1.0
    %v933 = vmax.f32 %v925, 1.0
    %v934 = vmax.f32 %v928, 1.0
    %v935 = vmax.f32 %v931, 1.0
    %v936 = vrcp.pop %v932
    %v937 = vrcp.pop %v933
    %v938 = vrcp.pop %v934
    %v939 = vrcp.pop %v935
    %v940 = vmul.f32 %v902, %v936
    %v941 = vmul.f32 %v907, %v937
    %v942 = vmul.f32 %v912, %v938
    %v943 = vmul.f32 %v917, %v939
    %v944 = vadd.f32 %v940, %v941
    %v945 = vadd.f32 %v944, %v942
    %v946 = vadd.f32 %v945, %v943
    %v947 = vrot.slane %v946, 4
    %v948 = vadd.f32 %v946, %v947
    %v949 = vrot.slane %v948, 2
    %v950 = vadd.f32 %v948, %v949
    %v951 = vrot.slane %v950, 1
    %v952 = vadd.f32 %v950, %v951
    %v953 = vrcp.pop 32.0
    %v954 = vmul.f32 %v952, %v953
    %v955 = vsub.f32 %v940, %v954
    %v956 = vsub.f32 %v941, %v954
    %v957 = vsub.f32 %v942, %v954
    %v958 = vsub.f32 %v943, %v954
    %v959 = vmul.f32 %v955, %v955
    %v960 = vmul.f32 %v956, %v956
    %v961 = vmul.f32 %v957, %v957
    %v962 = vmul.f32 %v958, %v958
    %v963 = vadd.f32 %v959, %v960
    %v964 = vadd.f32 %v963, %v961
    %v965 = vadd.f32 %v964, %v962
    %v966 = vrot.slane %v965, 4
    %v967 = vadd.f32 %v965, %v966
    %v968 = vrot.slane %v967, 2
    %v969 = vadd.f32 %v967, %v968
    %v970 = vrot.slane %v969, 1
    %v971 = vadd.f32 %v969, %v970
    %v972 = vmul.f32 %v971, %v953
    %v973 = vadd.f32 %v972, 1e-05
    %v974 = vrsqrt.pop %v973
    %v975 = vmul.f32 %v955, %v974
    %v976 = vmul.f32 %v956, %v974
    %v977 = vmul.f32 %v957, %v974
    %v978 = vmul.f32 %v958, %v974
    %v979 = vlaneseq
    %v980 = vshrl.u32 %v979, 7
    %v981 = vsub.s32 0, %v980
    %v982 = vrot.slane %v43, %v981
    %v983 = vmul.f32 %v975, %v982
    %v984 = vmul.f32 %v976, %v982
    %v985 = vmul.f32 %v977, %v982
    %v986 = vmul.f32 %v978, %v982
    %v987 = vlaneseq
    %v988 = vshrl.u32 %v987, 7
    %v989 = vsub.s32 1, %v988
    %v990 = vrot.slane %v43, %v989
    %v991 = vadd.f32 %v983, %v990
    %v992 = vadd.f32 %v984, %v990
    %v993 = vadd.f32 %v985, %v990
    %v994 = vadd.f32 %v986, %v990
    %995 = vst [vmem:[#allocation2] sm:$0xff] %v991
    %996 = vst [vmem:[#allocation2 + $0x8] sm:$0xff] %v992
    %997 = vst [vmem:[#allocation2 + $0x10] sm:$0xff] %v993
    %998 = vst [vmem:[#allocation2 + $0x18] sm:$0xff] %v994
    // Predicated region
    $region22: #{forward.1} parent=1 // pred_check
      _
    $region23: #{forward.1} parent=1 // pred_check_branch
      %1000 = sbr.rel (0) target = $region25
    $region24: #{forward.1} parent=1 // pred_region
      %s1002 = ssub.s32 512, 512
      %1003 = vsyncadd [#allocation3], %s1002
      %s1004 = sshll.u32 [#allocation2], 4
      %s1005 = int_to_ptr.vmem [resolvable:$true] %s1004
      %1010 = dma.vmem_to_hbm [thread:$0]  %s1005, 512, %s5, [#allocation3], 128, 128, 8
    $region25: #{forward.1} parent=1 // pred_fallthru
      _
    // Predicated region
    $region26: #{forward.1} parent=1 // pred_check
      _
    $region27: #{forward.1} parent=1 // pred_check_branch
      %1012 = sbr.rel (0) target = $region29
    $region28: #{forward.1} parent=1 // pred_region
      %1013 = dma.done [#allocation3], 512
    $region29: #{forward.1} parent=1 // pred_fallthru
      _
    %1014 = vsyncpa [#allocation3], 1

</llo_original>
